<compile_context>
chip_gen: v5e
topology: v5e:2x2
jax: 0.10.0
libtpu: 0.0.40
codegen_flags: <defaults>
</compile_context>

<pallas_src>
import functools
import math

import jax
import jax.numpy as jnp
from jax.experimental import pallas as pl
from jax.experimental.pallas import tpu as pltpu

LANES = 128
_HALF_PI = float(0.5 * math.pi)


def _round_up(a, b):
    return ((a + b - 1) // b) * b


def _sin_poly(u):
    """sin(u) for u in [-pi/2, pi/2]: odd polynomial through u^11, |err| ~ 1e-7."""
    u2 = u * u
    p = jnp.float32(-2.5052108385441718e-08)
    p = p * u2 + jnp.float32(2.7557319223985893e-06)
    p = p * u2 + jnp.float32(-1.9841269841269841e-04)
    p = p * u2 + jnp.float32(8.3333333333333333e-03)
    p = p * u2 + jnp.float32(-1.6666666666666666e-01)
    p = p * u2 + jnp.float32(1.0)
    return u * p


def _fourier_kernel(x_ref, w_ref, fcb_ref, bias_ref, scale_ref, o_ref, *, fast_trig):
    # x_ref:    (R, 128) f32 VMEM   lane-dense slab of inputs
    # w_ref:    (2D,)    f32 SMEM   fc1.weight flattened: [w_sin(1..D), w_cos(1..D)]
    # fcb_ref:  (1,)     f32 SMEM   fc1.bias
    # bias_ref: (1,)     f32 SMEM   self.bias  (= -min(x))
    # scale_ref:(1,)     f32 SMEM   self.scale (= pi / (max(x) - min(x)))
    # o_ref:    (R, 128) f32 VMEM
    degree = w_ref.shape[0] // 2

    # Scalars hoisted once; scale/shift the whole lane-dense slab on the VPU.
    theta = (x_ref[...] - bias_ref[0]) * scale_ref[0]        # (R, 128), in [0, pi]

    if fast_trig:
        # Range-restricted trig: exact folds into [-pi/2, pi/2] + short odd poly.
        half_pi = jnp.float32(_HALF_PI)
        s1 = _sin_poly(half_pi - jnp.abs(theta - half_pi))   # sin(theta)
        c1 = _sin_poly(half_pi - theta)                      # cos(theta)
    else:
        s1 = jnp.sin(theta)
        c1 = jnp.cos(theta)

    # Clenshaw recurrences fold fc1's weights into the harmonic evaluation:
    #   sum_k w_k sin(k*t) = sin(t) * bs1
    #   sum_k v_k cos(k*t) = cos(t) * bc1 - bc2
    # with b_k = a_k + 2*cos(t)*b_{k+1} - b_{k+2}, b_{D+1} = b_{D+2} = 0.
    t = jnp.float32(2.0) * c1
    bs1 = w_ref[degree - 1]
    bc1 = w_ref[2 * degree - 1]
    bs2 = jnp.float32(0.0)
    bc2 = jnp.float32(0.0)
    for k in range(degree - 1, 0, -1):                       # static unroll over D
        bs1, bs2 = w_ref[k - 1] + t * bs1 - bs2, bs1
        bc1, bc2 = w_ref[degree + k - 1] + t * bc1 - bc2, bc1

    o_ref[...] = fcb_ref[0] + s1 * bs1 + c1 * bc1 - bc2


def fourier_net_forward(x, fc1_weight, fc1_bias, bias, scale, *,
                        block_rows=4096, fast_trig=True):
    """x: (N, 1) f32; fc1_weight: (1, 2D); fc1_bias: (1,); bias, scale: scalars."""
    n = x.shape[0]
    two_d = fc1_weight.shape[1]
    degree = two_d // 2
    assert degree >= 1 and two_d == 2 * degree

    rows = -(-n // LANES)                       # 128-lane rows needed
    blk = min(_round_up(rows, 8), _round_up(max(block_rows, 8), 8))
    if blk >= rows:
        blk = rows                              # single full-extent block (always legal)
    grid_rows = -(-rows // blk)                 # ragged last block is masked by Pallas

    lane_aligned = (n % LANES == 0)
    x_flat = x.reshape(-1).astype(jnp.float32)
    if lane_aligned:
        x2d = x_flat.reshape(rows, LANES)       # fast path: no pad, no tail slice
    else:
        # TODO(synk): only non-lane-aligned N pays this pad + final tail slice.
        x2d = jnp.pad(x_flat, (0, rows * LANES - n)).reshape(rows, LANES)

    w_flat = fc1_weight.reshape(-1).astype(jnp.float32)                 # (2D,)
    fcb = fc1_bias.reshape((1,)).astype(jnp.float32)
    bias_arr = jnp.asarray(bias, jnp.float32).reshape((1,))
    scale_arr = jnp.asarray(scale, jnp.float32).reshape((1,))

    vmem = pltpu.MemorySpace.VMEM
    smem = pltpu.MemorySpace.SMEM

    cost = pl.CostEstimate(
        flops=int(rows * LANES * (6 * degree + 32)),
        transcendentals=0 if fast_trig else int(2 * rows * LANES),
        bytes_accessed=int(8 * rows * LANES),
    )

    kernel = functools.partial(_fourier_kernel, fast_trig=fast_trig)

    out2d = pl.pallas_call(
        kernel,
        out_shape=jax.ShapeDtypeStruct((rows, LANES), jnp.float32),
        grid=(grid_rows,),
        in_specs=[
            pl.BlockSpec((blk, LANES), lambda i: (i, 0), memory_space=vmem),  # x slab
            pl.BlockSpec(memory_space=smem),                                  # fc1 weights
            pl.BlockSpec(memory_space=smem),                                  # fc1 bias
            pl.BlockSpec(memory_space=smem),                                  # scaler bias
            pl.BlockSpec(memory_space=smem),                                  # scaler scale
        ],
        out_specs=pl.BlockSpec((blk, LANES), lambda i: (i, 0), memory_space=vmem),
        compiler_params=pltpu.CompilerParams(
            dimension_semantics=("parallel",)),
        cost_estimate=cost,
    )(x2d, w_flat, fcb, bias_arr, scale_arr)

    out_flat = out2d.reshape(-1)
    if not lane_aligned:
        out_flat = out_flat[:n]
    return out_flat.reshape(n, 1)


def reference_forward(x, fc1_weight, fc1_bias, bias, scale, degree):
    xs = (x - bias) * scale                                         # (N, 1)
    feats = jnp.concatenate(
        [jnp.sin(xs * i) for i in range(1, degree + 1)]
        + [jnp.cos(xs * i) for i in range(1, degree + 1)], axis=1)  # (N, 2D)
    return feats @ fc1_weight.T + fc1_bias                          # (N, 1)


if __name__ == "__main__":
    degree = 4

    key = jax.random.PRNGKey(0)
    k_x, k_w, k_b = jax.random.split(key, 3)

    # fc1 = nn.Linear(2*degree, 1): PyTorch-style uniform init bound
    fan_in = 2 * degree
    bound = 1.0 / math.sqrt(fan_in)
    fc1_weight = jax.random.uniform(k_w, (1, 2 * degree), dtype=jnp.float32,
                                    minval=-bound, maxval=bound)
    fc1_bias = jax.random.uniform(k_b, (1,), dtype=jnp.float32,
                                  minval=-bound, maxval=bound)

    # (n, block_rows, fast_trig):
    #   lane-aligned single block / lane-aligned multi-step grid with masked
    #   last block / ragged N (pad fallback) / jnp.sin-cos fallback lowering.
    cases = ((256, 4096, True), (2560, 8, True), (300, 4096, True), (256, 4096, False))
    for n, blk_rows, fast in cases:
        x = jax.random.uniform(k_x, (n, 1), dtype=jnp.float32, minval=0.0, maxval=2.0)

        # set_scaler(x): bias = -min(x), scale = pi / (max(x) - min(x))
        # (unguarded if all inputs are equal, matching the PyTorch module).
        min_x = jnp.min(x)
        max_x = jnp.max(x)
        scaler_bias = -min_x
        scaler_scale = jnp.pi / (max_x - min_x)

        out = fourier_net_forward(x, fc1_weight, fc1_bias, scaler_bias, scaler_scale,
                                  block_rows=blk_rows, fast_trig=fast)
        out = jax.block_until_ready(out)

        ref = reference_forward(x, fc1_weight, fc1_bias, scaler_bias, scaler_scale, degree)
        assert out.shape == (n, 1), out.shape
        assert jnp.allclose(out, ref, atol=1e-4, rtol=1e-4), (n, blk_rows, fast)

    print("KERNEL_OK")
</pallas_src>

<mosaic_0001>
module attributes {stable_mosaic.version = 11 : i64} {
  func.func @_fourier_kernel(%arg0: i32, %arg1: memref<2x128xf32, #tpu.memory_space<vmem>>, %arg2: memref<8xf32, #tpu.memory_space<smem>>, %arg3: memref<1xf32, #tpu.memory_space<smem>>, %arg4: memref<1xf32, #tpu.memory_space<smem>>, %arg5: memref<1xf32, #tpu.memory_space<smem>>, %arg6: memref<2x128xf32, #tpu.memory_space<vmem>>) attributes {dimension_semantics = [#tpu.dimension_semantics<parallel>], iteration_bounds = array<i64: 1>, scalar_prefetch = 0 : i64, scratch_operands = 0 : i64, tpu.core_type = #tpu.core_type<tc>, window_params = [{transform_indices = @transform_0, window_bounds = array<i64: 2, 128>}, {transform_indices = @transform_1, window_bounds = array<i64: 8>}, {transform_indices = @transform_2, window_bounds = array<i64: 1>}, {transform_indices = @transform_3, window_bounds = array<i64: 1>}, {transform_indices = @transform_4, window_bounds = array<i64: 1>}, {transform_indices = @transform_5, window_bounds = array<i64: 2, 128>}]} {
    %c0 = arith.constant 0 : index
    %c0_0 = arith.constant 0 : index
    %0 = vector.load %arg1[%c0, %c0_0] : memref<2x128xf32, #tpu.memory_space<vmem>>, vector<2x128xf32>
    %c0_1 = arith.constant 0 : index
    %1 = memref.load %arg4[%c0_1] : memref<1xf32, #tpu.memory_space<smem>>
    %2 = vector.broadcast %1 : f32 to vector<2x128xf32>
    %3 = arith.subf %0, %2 : vector<2x128xf32>
    %c0_2 = arith.constant 0 : index
    %4 = memref.load %arg5[%c0_2] : memref<1xf32, #tpu.memory_space<smem>>
    %5 = vector.broadcast %4 : f32 to vector<2x128xf32>
    %6 = arith.mulf %3, %5 : vector<2x128xf32>
    %cst = arith.constant 1.57079637 : f32
    %7 = vector.broadcast %cst : f32 to vector<2x128xf32>
    %8 = arith.subf %6, %7 : vector<2x128xf32>
    %9 = math.absf %8 : vector<2x128xf32>
    %cst_3 = arith.constant 1.57079637 : f32
    %10 = vector.broadcast %cst_3 : f32 to vector<2x128xf32>
    %11 = arith.subf %10, %9 : vector<2x128xf32>
    %12 = arith.mulf %11, %11 : vector<2x128xf32>
    %cst_4 = arith.constant -2.50521079E-8 : f32
    %13 = vector.broadcast %cst_4 : f32 to vector<2x128xf32>
    %14 = arith.mulf %13, %12 : vector<2x128xf32>
    %cst_5 = arith.constant 2.75573188E-6 : f32
    %15 = vector.broadcast %cst_5 : f32 to vector<2x128xf32>
    %16 = arith.addf %14, %15 : vector<2x128xf32>
    %17 = arith.mulf %16, %12 : vector<2x128xf32>
    %cst_6 = arith.constant -1.98412701E-4 : f32
    %18 = vector.broadcast %cst_6 : f32 to vector<2x128xf32>
    %19 = arith.addf %17, %18 : vector<2x128xf32>
    %20 = arith.mulf %19, %12 : vector<2x128xf32>
    %cst_7 = arith.constant 0.00833333377 : f32
    %21 = vector.broadcast %cst_7 : f32 to vector<2x128xf32>
    %22 = arith.addf %20, %21 : vector<2x128xf32>
    %23 = arith.mulf %22, %12 : vector<2x128xf32>
    %cst_8 = arith.constant -0.166666672 : f32
    %24 = vector.broadcast %cst_8 : f32 to vector<2x128xf32>
    %25 = arith.addf %23, %24 : vector<2x128xf32>
    %26 = arith.mulf %25, %12 : vector<2x128xf32>
    %cst_9 = arith.constant 1.000000e+00 : f32
    %27 = vector.broadcast %cst_9 : f32 to vector<2x128xf32>
    %28 = arith.addf %26, %27 : vector<2x128xf32>
    %29 = arith.mulf %11, %28 : vector<2x128xf32>
    %cst_10 = arith.constant 1.57079637 : f32
    %30 = vector.broadcast %cst_10 : f32 to vector<2x128xf32>
    %31 = arith.subf %30, %6 : vector<2x128xf32>
    %32 = arith.mulf %31, %31 : vector<2x128xf32>
    %cst_11 = arith.constant -2.50521079E-8 : f32
    %33 = vector.broadcast %cst_11 : f32 to vector<2x128xf32>
    %34 = arith.mulf %33, %32 : vector<2x128xf32>
    %cst_12 = arith.constant 2.75573188E-6 : f32
    %35 = vector.broadcast %cst_12 : f32 to vector<2x128xf32>
    %36 = arith.addf %34, %35 : vector<2x128xf32>
    %37 = arith.mulf %36, %32 : vector<2x128xf32>
    %cst_13 = arith.constant -1.98412701E-4 : f32
    %38 = vector.broadcast %cst_13 : f32 to vector<2x128xf32>
    %39 = arith.addf %37, %38 : vector<2x128xf32>
    %40 = arith.mulf %39, %32 : vector<2x128xf32>
    %cst_14 = arith.constant 0.00833333377 : f32
    %41 = vector.broadcast %cst_14 : f32 to vector<2x128xf32>
    %42 = arith.addf %40, %41 : vector<2x128xf32>
    %43 = arith.mulf %42, %32 : vector<2x128xf32>
    %cst_15 = arith.constant -0.166666672 : f32
    %44 = vector.broadcast %cst_15 : f32 to vector<2x128xf32>
    %45 = arith.addf %43, %44 : vector<2x128xf32>
    %46 = arith.mulf %45, %32 : vector<2x128xf32>
    %cst_16 = arith.constant 1.000000e+00 : f32
    %47 = vector.broadcast %cst_16 : f32 to vector<2x128xf32>
    %48 = arith.addf %46, %47 : vector<2x128xf32>
    %49 = arith.mulf %31, %48 : vector<2x128xf32>
    %cst_17 = arith.constant 2.000000e+00 : f32
    %50 = vector.broadcast %cst_17 : f32 to vector<2x128xf32>
    %51 = arith.mulf %50, %49 : vector<2x128xf32>
    %c3 = arith.constant 3 : index
    %52 = memref.load %arg2[%c3] : memref<8xf32, #tpu.memory_space<smem>>
    %c7 = arith.constant 7 : index
    %53 = memref.load %arg2[%c7] : memref<8xf32, #tpu.memory_space<smem>>
    %c2 = arith.constant 2 : index
    %54 = memref.load %arg2[%c2] : memref<8xf32, #tpu.memory_space<smem>>
    %55 = vector.broadcast %52 : f32 to vector<2x128xf32>
    %56 = arith.mulf %51, %55 : vector<2x128xf32>
    %57 = vector.broadcast %54 : f32 to vector<2x128xf32>
    %58 = arith.addf %57, %56 : vector<2x128xf32>
    %cst_18 = arith.constant 0.000000e+00 : f32
    %59 = vector.broadcast %cst_18 : f32 to vector<2x128xf32>
    %60 = arith.subf %58, %59 : vector<2x128xf32>
    %c6 = arith.constant 6 : index
    %61 = memref.load %arg2[%c6] : memref<8xf32, #tpu.memory_space<smem>>
    %62 = vector.broadcast %53 : f32 to vector<2x128xf32>
    %63 = arith.mulf %51, %62 : vector<2x128xf32>
    %64 = vector.broadcast %61 : f32 to vector<2x128xf32>
    %65 = arith.addf %64, %63 : vector<2x128xf32>
    %cst_19 = arith.constant 0.000000e+00 : f32
    %66 = vector.broadcast %cst_19 : f32 to vector<2x128xf32>
    %67 = arith.subf %65, %66 : vector<2x128xf32>
    %c1 = arith.constant 1 : index
    %68 = memref.load %arg2[%c1] : memref<8xf32, #tpu.memory_space<smem>>
    %69 = arith.mulf %51, %60 : vector<2x128xf32>
    %70 = vector.broadcast %68 : f32 to vector<2x128xf32>
    %71 = arith.addf %70, %69 : vector<2x128xf32>
    %72 = vector.broadcast %52 : f32 to vector<2x128xf32>
    %73 = arith.subf %71, %72 : vector<2x128xf32>
    %c5 = arith.constant 5 : index
    %74 = memref.load %arg2[%c5] : memref<8xf32, #tpu.memory_space<smem>>
    %75 = arith.mulf %51, %67 : vector<2x128xf32>
    %76 = vector.broadcast %74 : f32 to vector<2x128xf32>
    %77 = arith.addf %76, %75 : vector<2x128xf32>
    %78 = vector.broadcast %53 : f32 to vector<2x128xf32>
    %79 = arith.subf %77, %78 : vector<2x128xf32>
    %c0_20 = arith.constant 0 : index
    %80 = memref.load %arg2[%c0_20] : memref<8xf32, #tpu.memory_space<smem>>
    %81 = arith.mulf %51, %73 : vector<2x128xf32>
    %82 = vector.broadcast %80 : f32 to vector<2x128xf32>
    %83 = arith.addf %82, %81 : vector<2x128xf32>
    %84 = arith.subf %83, %60 : vector<2x128xf32>
    %c4 = arith.constant 4 : index
    %85 = memref.load %arg2[%c4] : memref<8xf32, #tpu.memory_space<smem>>
    %86 = arith.mulf %51, %79 : vector<2x128xf32>
    %87 = vector.broadcast %85 : f32 to vector<2x128xf32>
    %88 = arith.addf %87, %86 : vector<2x128xf32>
    %89 = arith.subf %88, %67 : vector<2x128xf32>
    %c0_21 = arith.constant 0 : index
    %90 = memref.load %arg3[%c0_21] : memref<1xf32, #tpu.memory_space<smem>>
    %91 = arith.mulf %29, %84 : vector<2x128xf32>
    %92 = vector.broadcast %90 : f32 to vector<2x128xf32>
    %93 = arith.addf %92, %91 : vector<2x128xf32>
    %94 = arith.mulf %49, %89 : vector<2x128xf32>
    %95 = arith.addf %93, %94 : vector<2x128xf32>
    %96 = arith.subf %95, %79 : vector<2x128xf32>
    %c0_22 = arith.constant 0 : index
    %c0_23 = arith.constant 0 : index
    %97 = vector.load %arg6[%c0_22, %c0_23] : memref<2x128xf32, #tpu.memory_space<vmem>>, vector<2x128xf32>
    tpu.vector_store %arg6[%c0_22, %c0_23], %96 {strides = array<i32>} : memref<2x128xf32, #tpu.memory_space<vmem>>, vector<2x128xf32>,
    return
  }
  func.func @transform_0(%arg0: i32) -> (i32, i32) {
    %c0_i32 = arith.constant 0 : i32
    %c0_i32_0 = arith.constant 0 : i32
    return %arg0, %c0_i32 : i32, i32
  }
  func.func @transform_1(%arg0: i32) -> i32 {
    %c0_i32 = arith.constant 0 : i32
    %c0_i32_0 = arith.constant 0 : i32
    return %c0_i32 : i32
  }
  func.func @transform_2(%arg0: i32) -> i32 {
    %c0_i32 = arith.constant 0 : i32
    %c0_i32_0 = arith.constant 0 : i32
    return %c0_i32 : i32
  }
  func.func @transform_3(%arg0: i32) -> i32 {
    %c0_i32 = arith.constant 0 : i32
    %c0_i32_0 = arith.constant 0 : i32
    return %c0_i32 : i32
  }
  func.func @transform_4(%arg0: i32) -> i32 {
    %c0_i32 = arith.constant 0 : i32
    %c0_i32_0 = arith.constant 0 : i32
    return %c0_i32 : i32
  }
  func.func @transform_5(%arg0: i32) -> (i32, i32) {
    %c0_i32 = arith.constant 0 : i32
    %c0_i32_0 = arith.constant 0 : i32
    return %arg0, %c0_i32 : i32, i32
  }
}

</mosaic_0001>

<llo_original>
// kernel: tpu_custom_call.1
$region0: #{tpu_custom_call.1}
  #allocation0 [shape = 'u32[]', space=smem, size = 0x4, offset = 0x4, fixed_abs, tag = 'smem constant byte address 0x4 - core index']
  #allocation1 [shape = 'u32[72,128]{1,0:T(1,128)}', space=vmem, size = 0x9000, scoped, tag = 'internal scratch']
  #allocation2 [shape = 'f32[1]{0:T(128)S(6)}', space=smem, size = 0x200, scoped, tag = 'scoped memory for tpu_custom_call.1']
  #allocation3 [shape = 'f32[1]{0:T(128)S(6)}', space=smem, size = 0x200, scoped, tag = 'scoped memory for tpu_custom_call.1']
  #allocation4 [shape = 'f32[1]{0:T(128)S(6)}', space=smem, size = 0x200, scoped, tag = 'scoped memory for tpu_custom_call.1']
  %s0 = inlined_call_operand.vmem [shape: f32[2,128], index: 0, kind: input, shape index: {}]
  %s1 = inlined_call_operand.vmem [shape: f32[8], index: 1, kind: input, shape index: {}]
  %s2 = inlined_call_operand.<no memory space> [shape: f32[1], index: 2, kind: input, shape index: {}]
  %s3 = inlined_call_operand.<no memory space> [shape: f32[1], index: 3, kind: input, shape index: {}]
  %s4 = inlined_call_operand.<no memory space> [shape: f32[1], index: 4, kind: input, shape index: {}]
  %s5 = inlined_call_operand.hbm [shape: f32[2,128], index: 5, kind: output, shape index: {}]
  %s6 = sld [smem:[#allocation0]]
  $region34: #{tpu_custom_call.1} parent=0
    _
  %s8 = ssub.s32 1, %s6
  %s9 = scalar_select 0, %s8, %s6
  %10 = sst [smem:[#allocation2]] %s2
  %11 = sst [smem:[#allocation3]] %s3
  %12 = sst [smem:[#allocation4]] %s4
  $region1: #{tpu_custom_call.1} parent=0
    #allocation5 [shape = 'u8[512]{0}', space=smem, size = 0x200, scoped, tag = 'input window, operand 1, single buffered']
    #allocation6 [shape = 's32[1]{0}', space=sflag, size = 0x4, scoped, tag = 'scoped memory for tpu_custom_call.1']
    #allocation7 [shape = 's32[1]{0}', space=sflag, size = 0x4, scoped, tag = 'scoped memory for tpu_custom_call.1']
    #allocation8 [shape = 'u8[1024]{0}', space=vmem, size = 0x400, scoped, tag = 'output window, operand 0, single buffered']
    %13 = vsyncpa [#allocation7], 0
    %14 = vsyncpa [#allocation6], 0
    // Predicated region
    $region2: #{tpu_custom_call.1} parent=1 // pred_check
      _
    $region3: #{tpu_custom_call.1} parent=1 // pred_check_branch
      %16 = sbr.rel (0) target = $region5
    $region4: #{tpu_custom_call.1} parent=1 // pred_region
      _
    $region5: #{tpu_custom_call.1} parent=1 // pred_fallthru
      _
    // Predicated region
    $region6: #{tpu_custom_call.1} parent=1 // pred_check
      _
    $region7: #{tpu_custom_call.1} parent=1 // pred_check_branch
      %18 = sbr.rel (0) target = $region9
    $region8: #{tpu_custom_call.1} parent=1 // pred_region
      %20 = vsyncadd [#allocation7], 0
      %s22 = sshll.u32 %s1, 4
      %s23 = int_to_ptr.vmem [resolvable:$true] %s22
      %25 = dma.vmem_to_smem %s23, 16, [#allocation5], [#allocation7]
    $region9: #{tpu_custom_call.1} parent=1 // pred_fallthru
      _
    // Predicated region
    $region10: #{tpu_custom_call.1} parent=1 // pred_check
      _
    $region11: #{tpu_custom_call.1} parent=1 // pred_check_branch
      %27 = sbr.rel (0) target = $region13
    $region12: #{tpu_custom_call.1} parent=1 // pred_region
      _
    $region13: #{tpu_custom_call.1} parent=1 // pred_fallthru
      _
    // Predicated region
    $region14: #{tpu_custom_call.1} parent=1 // pred_check
      _
    $region15: #{tpu_custom_call.1} parent=1 // pred_check_branch
      %29 = sbr.rel (0) target = $region17
    $region16: #{tpu_custom_call.1} parent=1 // pred_region
      _
    $region17: #{tpu_custom_call.1} parent=1 // pred_fallthru
      _
    // Predicated region
    $region18: #{tpu_custom_call.1} parent=1 // pred_check
      _
    $region19: #{tpu_custom_call.1} parent=1 // pred_check_branch
      %31 = sbr.rel (0) target = $region21
    $region20: #{tpu_custom_call.1} parent=1 // pred_region
      _
    $region21: #{tpu_custom_call.1} parent=1 // pred_fallthru
      _
    // Predicated region
    $region22: #{tpu_custom_call.1} parent=1 // pred_check
      _
    $region23: #{tpu_custom_call.1} parent=1 // pred_check_branch
      %33 = sbr.rel (0) target = $region25
    $region24: #{tpu_custom_call.1} parent=1 // pred_region
      %35 = dma.done [#allocation7], 16
    $region25: #{tpu_custom_call.1} parent=1 // pred_fallthru
      _
    %36 = sfence
    %v37 = vld [vmem:[%s0] sm:$0x3]
    %s38 = sld [smem:[#allocation3]]
    %v39 = vstv %s38
    %v40 = vsub.f32 %v37, %v39
    %s41 = sld [smem:[#allocation4]]
    %v42 = vstv %s41
    %v43 = vmul.f32 %v40, %v42
    %v44 = vsub.f32 %v43, 1.5707964
    %v45 = vand.u32 2147483647, %v44
    %v46 = vsub.f32 1.5707964, %v45
    %v47 = vmul.f32 %v46, %v46
    %v48 = vmul.f32 %v47, -2.5052108e-08
    %v49 = vadd.f32 %v48, 2.7557319e-06
    %v50 = vmul.f32 %v49, %v47
    %v51 = vadd.f32 %v50, -0.0001984127
    %v52 = vmul.f32 %v51, %v47
    %v53 = vadd.f32 %v52, 0.008333334
    %v54 = vmul.f32 %v53, %v47
    %v55 = vadd.f32 %v54, -0.16666667
    %v56 = vmul.f32 %v55, %v47
    %v57 = vadd.f32 %v56, 1.0
    %v58 = vmul.f32 %v46, %v57
    %v59 = vsub.f32 1.5707964, %v43
    %v60 = vmul.f32 %v59, %v59
    %v61 = vmul.f32 %v60, -2.5052108e-08
    %v62 = vadd.f32 %v61, 2.7557319e-06
    %v63 = vmul.f32 %v62, %v60
    %v64 = vadd.f32 %v63, -0.0001984127
    %v65 = vmul.f32 %v64, %v60
    %v66 = vadd.f32 %v65, 0.008333334
    %v67 = vmul.f32 %v66, %v60
    %v68 = vadd.f32 %v67, -0.16666667
    %v69 = vmul.f32 %v68, %v60
    %v70 = vadd.f32 %v69, 1.0
    %v71 = vmul.f32 %v59, %v70
    %v72 = vmul.f32 %v71, 2.0
    %s73 = sld [smem:[#allocation5 + $0x3]]
    %s74 = sld [smem:[#allocation5 + $0x7]]
    %s75 = sld [smem:[#allocation5 + $0x2]]
    %v76 = vstv %s73
    %v77 = vmul.f32 %v72, %v76
    %v78 = vstv %s75
    %v79 = vadd.f32 %v78, %v77
    %s80 = sld [smem:[#allocation5 + $0x6]]
    %v81 = vstv %s74
    %v82 = vmul.f32 %v72, %v81
    %v83 = vstv %s80
    %v84 = vadd.f32 %v83, %v82
    %s85 = sld [smem:[#allocation5 + $0x1]]
    %v86 = vmul.f32 %v72, %v79
    %v87 = vstv %s85
    %v88 = vadd.f32 %v87, %v86
    %v89 = vsub.f32 %v88, %v76
    %s90 = sld [smem:[#allocation5 + $0x5]]
    %v91 = vmul.f32 %v72, %v84
    %v92 = vstv %s90
    %v93 = vadd.f32 %v92, %v91
    %v94 = vsub.f32 %v93, %v81
    %s95 = sld [smem:[#allocation5]]
    %v96 = vmul.f32 %v72, %v89
    %v97 = vstv %s95
    %v98 = vadd.f32 %v97, %v96
    %v99 = vsub.f32 %v98, %v79
    %s100 = sld [smem:[#allocation5 + $0x4]]
    %v101 = vmul.f32 %v72, %v94
    %v102 = vstv %s100
    %v103 = vadd.f32 %v102, %v101
    %v104 = vsub.f32 %v103, %v84
    %s105 = sld [smem:[#allocation2]]
    %v106 = vmul.f32 %v58, %v99
    %v107 = vstv %s105
    %v108 = vadd.f32 %v107, %v106
    %v109 = vmul.f32 %v71, %v104
    %v110 = vadd.f32 %v108, %v109
    %v111 = vsub.f32 %v110, %v94
    %112 = vst [vmem:[#allocation8] sm:$0x3] %v111
    // Predicated region
    $region26: #{tpu_custom_call.1} parent=1 // pred_check
      _
    $region27: #{tpu_custom_call.1} parent=1 // pred_check_branch
      %114 = sbr.rel (0) target = $region29
    $region28: #{tpu_custom_call.1} parent=1 // pred_region
      %116 = vsyncadd [#allocation6], 0
      %s118 = sshll.u32 [#allocation8], 4
      %s119 = int_to_ptr.vmem [resolvable:$true] %s118
      %s120 = sshll.u32 %s5, 4
      %s121 = int_to_ptr.hbm [resolvable:$true] %s120
      %123 = dma.vmem_to_hbm [thread:$0]  %s119, 32, %s121, [#allocation6]
    $region29: #{tpu_custom_call.1} parent=1 // pred_fallthru
      _
    // Predicated region
    $region30: #{tpu_custom_call.1} parent=1 // pred_check
      _
    $region31: #{tpu_custom_call.1} parent=1 // pred_check_branch
      %125 = sbr.rel (0) target = $region33
    $region32: #{tpu_custom_call.1} parent=1 // pred_region
      %127 = dma.done [#allocation6], 32
    $region33: #{tpu_custom_call.1} parent=1 // pred_fallthru
      _
    %128 = vsyncpa [#allocation6], 1
    %129 = vsyncpa [#allocation7], 1

</llo_original>
